<compile_context>
chip_gen: v5e
topology: v5e:2x2
jax: 0.10.0
libtpu: 0.0.40
codegen_flags: <defaults>
</compile_context>

<pallas_src>
import functools

import jax
import jax.numpy as jnp
from jax.experimental import pallas as pl
from jax.experimental.pallas import tpu as pltpu

NEG_FILL = -float("inf") + 1.0   # same as torch: -float('inf') + 1.0  (== -inf)
LEAKY_SLOPE = 0.01               # F.leaky_relu default negative_slope


def _leaky_relu(x):
    return jnp.where(x >= 0, x, LEAKY_SLOPE * x)


# ----------------------------------------------------------------------------
# Fused kernel: full GraphLearningLayer forward (minus the straight-through
# argmax / one-hot, which stays as tiny host-side XLA ops).
# ----------------------------------------------------------------------------
def _gll_kernel(x_ref, wp_ref, w12_ref, wen_ref, w12b_ref, wo_ref,
                biases_ref, u_ref, bo_ref,
                ysoft_ref, kl_ref, *, tau):
    n = ysoft_ref.shape[0]          # number of nodes ("features")
    d = wen_ref.shape[0]            # out_feature_emb_size
    f32 = jnp.float32
    bf16 = jnp.bfloat16

    biases = biases_ref[...]                                   # (4, D) f32
    bp  = biases[0:1, :]                                       # proj bias
    b1  = biases[1:2, :]                                       # node2edge bias
    ben = biases[2:3, :]                                       # edge2node bias
    b2  = biases[3:4, :]                                       # node2edge2 bias

    # ---- proj ---------------------------------------------------------------
    h = jnp.dot(x_ref[...].astype(bf16), wp_ref[...],
                preferred_element_type=f32) + bp               # (N, D) f32

    # ---- node2edge over all ordered pairs (i, j) ----------------------------
    # Linear(cat(h[i], h[j])) == (h @ W_src)[i] + (h @ W_dst)[j] + b,
    # computed as one packed (D, 2D) matmul; bias folded once into the dst half.
    hs_hd = jnp.dot(h.astype(bf16), w12_ref[...],
                    preferred_element_type=f32)                # (N, 2D)
    hs = hs_hd[:, :d]
    hdb = hs_hd[:, d:] + b1
    he = _leaky_relu(hs[:, None, :] + hdb[None, :, :])         # (N, N, D)

    # ---- scatter_mean(h_e, src, dim=0): mean over N-1 real outgoing edges ---
    # The fictitious (i,i) pair is computed directly (no eye mask / extra
    # O(N^2*D) work) and subtracted from the full row sum.
    diag = _leaky_relu(hs + hdb)                               # (N, D)
    mean = (jnp.sum(he, axis=1) - diag) * f32(1.0 / (n - 1))   # (N, D)

    # ---- edge2node ----------------------------------------------------------
    h2 = _leaky_relu(jnp.dot(mean.astype(bf16), wen_ref[...],
                             preferred_element_type=f32) + ben)  # (N, D)

    # ---- node2edge2 ---------------------------------------------------------
    hs2_hd2 = jnp.dot(h2.astype(bf16), w12b_ref[...],
                      preferred_element_type=f32)              # (N, 2D)
    hs2 = hs2_hd2[:, :d]
    hd2b = hs2_hd2[:, d:] + b2
    he2 = _leaky_relu(hs2[:, None, :] + hd2b[None, :, :])      # (N, N, D)

    # ---- fc_out(concat([he2, he])) -> one score per ordered pair ------------
    wo = wo_ref[...]                                           # (2, D) f32
    wo1 = wo[0:1, :][None, :, :]                               # (1, 1, D)
    wo2 = wo[1:2, :][None, :, :]
    scores = jnp.sum(he2 * wo1 + he * wo2, axis=-1) + bo_ref[0]  # (N, N)

    # ---- coo_to_adj == identity on off-diagonal pairs + NEG_FILL diagonal ---
    ri = jax.lax.broadcasted_iota(jnp.int32, (n, n), 0)
    ci = jax.lax.broadcasted_iota(jnp.int32, (n, n), 1)
    logits = jnp.where(ri == ci, f32(NEG_FILL), scores)        # (N, N)

    # ---- gumbel_softmax_sample: softmax((logits + gumbel) / tau, dim=1) -----
    eps = 1e-10
    gumbel = -jnp.log(eps - jnp.log(u_ref[...] + eps))         # sample_gumbel
    y = (logits + gumbel) * f32(1.0 / tau)
    y = y - jnp.max(y, axis=1, keepdims=True)
    ey = jnp.exp(y)
    ysoft_ref[...] = ey / jnp.sum(ey, axis=1, keepdims=True)

    # ---- probs = softmax(logits, dim=1); kl_categorical_uniform -------------
    l = logits - jnp.max(logits, axis=1, keepdims=True)
    el = jnp.exp(l)
    probs = el / jnp.sum(el, axis=1, keepdims=True)
    kl = -jnp.sum(probs * jnp.log(probs + 1e-16)) * f32(1.0 / (n * n))
    kl_ref[...] = kl * jnp.ones((1, 1), f32)


# ----------------------------------------------------------------------------
# Parameter init (deterministic, synthetic — packed layout).
#   w12 / w12b : Linear(2D, D) split into [src | dst] halves, packed (D, 2D)
#   wo         : fc_out Linear(2D, 1) split into the (he2, he) halves, (2, D)
#   biases     : rows = [proj, node2edge, edge2node, node2edge2], (4, D)
#   bo         : fc_out bias, scalar in SMEM
# ----------------------------------------------------------------------------
def init_params(key, in_emb, out_emb):
    ks = jax.random.split(key, 7)
    s = 0.1
    rnd = lambda k, shp: jax.random.normal(k, shp, jnp.float32) * s
    d = out_emb
    return {
        "wp":     rnd(ks[0], (in_emb, d)),
        "w12":    rnd(ks[1], (d, 2 * d)),
        "wen":    rnd(ks[2], (d, d)),
        "w12b":   rnd(ks[3], (d, 2 * d)),
        "wo":     rnd(ks[4], (2, d)),
        "biases": rnd(ks[5], (4, d)),
        "bo":     rnd(ks[6], (1,)),
    }


# ----------------------------------------------------------------------------
# Forward (training-mode semantics: nn.Module defaults to training=True).
# prior_relation_index / prior_adj are unused by the reference forward pass.
# Requires num_features >= 2 (scatter_mean divides by N-1; each softmax row
# needs at least one finite entry).
# ----------------------------------------------------------------------------
@functools.partial(jax.jit, static_argnames=("num_features", "tau", "training"))
def graph_learning_forward(params, feature_emb, key, *, num_features,
                           tau=0.1, training=True):
    N = num_features
    assert N >= 2, "GraphLearningLayer needs at least 2 nodes (N-1 edges/node)."

    vmem = pl.BlockSpec(memory_space=pltpu.MemorySpace.VMEM)
    smem = pl.BlockSpec(memory_space=pltpu.MemorySpace.SMEM)
    bf16 = jnp.bfloat16

    # Uniform noise for sample_gumbel; the gumbel transform runs in-kernel.
    u = jax.random.uniform(key, (N, N), jnp.float32)

    inputs = (feature_emb,
              params["wp"].astype(bf16),
              params["w12"].astype(bf16),
              params["wen"].astype(bf16),
              params["w12b"].astype(bf16),
              params["wo"],        # stays f32 (used on the VPU/XLU path)
              params["biases"],    # f32
              u,
              params["bo"])        # scalar bias -> SMEM

    kernel = functools.partial(_gll_kernel, tau=float(tau))
    y_soft, kl = pl.pallas_call(
        kernel,
        out_shape=(jax.ShapeDtypeStruct((N, N), jnp.float32),
                   jax.ShapeDtypeStruct((1, 1), jnp.float32)),
        in_specs=[vmem] * 8 + [smem],
        out_specs=(vmem, vmem),
    )(*inputs)

    # Hard (straight-through) gumbel-softmax: forward value is the per-row
    # one-hot argmax.  torch.nonzero(one_hot).T == [row indices ; argmax cols].
    k = jnp.argmax(y_soft, axis=-1)
    relation = jax.nn.one_hot(k, N, dtype=jnp.float32)
    relation_index = jnp.stack([jnp.arange(N, dtype=jnp.int32),
                                k.astype(jnp.int32)])
    kl_loss = kl[0, 0] if training else None

    return {"relation": relation,
            "relation_index": relation_index,
            "kl_loss": kl_loss}


if __name__ == "__main__":
    NUM_FEATURES = 8        # number of graph nodes ("features")
    IN_EMB = 16             # in_feature_emb_size
    OUT_EMB = 128           # out_feature_emb_size (multiple of 128 -> lane-dense)

    root = jax.random.PRNGKey(0)
    pkey, xkey, gkey = jax.random.split(root, 3)

    params = init_params(pkey, IN_EMB, OUT_EMB)
    feature_emb = jax.random.normal(xkey, (NUM_FEATURES, IN_EMB), jnp.float32)

    out = graph_learning_forward(params, feature_emb, gkey,
                                 num_features=NUM_FEATURES, tau=0.1,
                                 training=True)

    jax.block_until_ready(out["relation"])
    jax.block_until_ready(out["relation_index"])
    jax.block_until_ready(out["kl_loss"])

    assert out["relation"].shape == (NUM_FEATURES, NUM_FEATURES)
    assert out["relation_index"].shape == (2, NUM_FEATURES)
    assert bool(jnp.all(jnp.sum(out["relation"], axis=-1) == 1.0))
    assert bool(jnp.isfinite(out["kl_loss"]))

    print("KERNEL_OK")
</pallas_src>

<mosaic_0001>
module attributes {stable_mosaic.version = 11 : i64} {
  func.func @_gll_kernel(%arg0: memref<8x16xf32, #tpu.memory_space<vmem>>, %arg1: memref<16x128xbf16, #tpu.memory_space<vmem>>, %arg2: memref<128x256xbf16, #tpu.memory_space<vmem>>, %arg3: memref<128x128xbf16, #tpu.memory_space<vmem>>, %arg4: memref<128x256xbf16, #tpu.memory_space<vmem>>, %arg5: memref<2x128xf32, #tpu.memory_space<vmem>>, %arg6: memref<4x128xf32, #tpu.memory_space<vmem>>, %arg7: memref<8x8xf32, #tpu.memory_space<vmem>>, %arg8: memref<1xf32, #tpu.memory_space<smem>>, %arg9: memref<8x8xf32, #tpu.memory_space<vmem>>, %arg10: memref<1x1xf32, #tpu.memory_space<vmem>>) attributes {dimension_semantics = [], scalar_prefetch = 0 : i64, scratch_operands = 0 : i64, tpu.core_type = #tpu.core_type<tc>} {
    %c0 = arith.constant 0 : index
    %c0_0 = arith.constant 0 : index
    %0 = vector.load %arg6[%c0, %c0_0] : memref<4x128xf32, #tpu.memory_space<vmem>>, vector<4x128xf32>
    %1 = vector.extract_strided_slice %0 {offsets = [0, 0], sizes = [1, 128], strides = [1, 1]} : vector<4x128xf32> to vector<1x128xf32>
    %2 = vector.extract_strided_slice %0 {offsets = [1, 0], sizes = [1, 128], strides = [1, 1]} : vector<4x128xf32> to vector<1x128xf32>
    %3 = vector.extract_strided_slice %0 {offsets = [2, 0], sizes = [1, 128], strides = [1, 1]} : vector<4x128xf32> to vector<1x128xf32>
    %4 = vector.extract_strided_slice %0 {offsets = [3, 0], sizes = [1, 128], strides = [1, 1]} : vector<4x128xf32> to vector<1x128xf32>
    %c0_1 = arith.constant 0 : index
    %c0_2 = arith.constant 0 : index
    %5 = vector.load %arg0[%c0_1, %c0_2] : memref<8x16xf32, #tpu.memory_space<vmem>>, vector<8x16xf32>
    %6 = arith.truncf %5 : vector<8x16xf32> to vector<8x16xbf16>
    %c0_3 = arith.constant 0 : index
    %c0_4 = arith.constant 0 : index
    %7 = vector.load %arg1[%c0_3, %c0_4] : memref<16x128xbf16, #tpu.memory_space<vmem>>, vector<16x128xbf16>
    %cst = arith.constant dense<0.000000e+00> : vector<8x128xf32>
    %8 = tpu.matmul %6, %7, %cst {dimension_numbers = #tpu.dot_dimension_numbers<[1], [0], [0], [1], [0, 0, 1, 1], [], []>} : vector<8x16xbf16>, vector<16x128xbf16>, vector<8x128xf32> -> vector<8x128xf32>
    %9 = vector.broadcast %1 : vector<1x128xf32> to vector<8x128xf32>
    %10 = arith.addf %8, %9 : vector<8x128xf32>
    %11 = arith.truncf %10 : vector<8x128xf32> to vector<8x128xbf16>
    %c0_5 = arith.constant 0 : index
    %c0_6 = arith.constant 0 : index
    %12 = vector.load %arg2[%c0_5, %c0_6] : memref<128x256xbf16, #tpu.memory_space<vmem>>, vector<128x256xbf16>
    %cst_7 = arith.constant dense<0.000000e+00> : vector<8x256xf32>
    %13 = tpu.matmul %11, %12, %cst_7 {dimension_numbers = #tpu.dot_dimension_numbers<[1], [0], [0], [1], [0, 0, 1, 1], [], []>} : vector<8x128xbf16>, vector<128x256xbf16>, vector<8x256xf32> -> vector<8x256xf32>
    %14 = vector.extract_strided_slice %13 {offsets = [0, 0], sizes = [8, 128], strides = [1, 1]} : vector<8x256xf32> to vector<8x128xf32>
    %15 = vector.extract_strided_slice %13 {offsets = [0, 128], sizes = [8, 128], strides = [1, 1]} : vector<8x256xf32> to vector<8x128xf32>
    %16 = vector.broadcast %2 : vector<1x128xf32> to vector<8x128xf32>
    %17 = arith.addf %15, %16 : vector<8x128xf32>
    %18 = vector.shape_cast %14 : vector<8x128xf32> to vector<8x1x128xf32>
    %19 = vector.shape_cast %17 : vector<8x128xf32> to vector<1x8x128xf32>
    %20 = vector.broadcast %18 : vector<8x1x128xf32> to vector<8x8x128xf32>
    %21 = vector.broadcast %19 : vector<1x8x128xf32> to vector<8x8x128xf32>
    %22 = arith.addf %20, %21 : vector<8x8x128xf32>
    %cst_8 = arith.constant 0.000000e+00 : f32
    %23 = vector.broadcast %cst_8 : f32 to vector<8x8x128xf32>
    %24 = arith.cmpf oge, %22, %23 : vector<8x8x128xf32>
    %cst_9 = arith.constant 0.00999999977 : f32
    %25 = vector.broadcast %cst_9 : f32 to vector<8x8x128xf32>
    %26 = arith.mulf %25, %22 : vector<8x8x128xf32>
    %27 = arith.select %24, %22, %26 : vector<8x8x128xi1>, vector<8x8x128xf32>
    %28 = arith.addf %14, %17 : vector<8x128xf32>
    %cst_10 = arith.constant 0.000000e+00 : f32
    %29 = vector.broadcast %cst_10 : f32 to vector<8x128xf32>
    %30 = arith.cmpf oge, %28, %29 : vector<8x128xf32>
    %cst_11 = arith.constant 0.00999999977 : f32
    %31 = vector.broadcast %cst_11 : f32 to vector<8x128xf32>
    %32 = arith.mulf %31, %28 : vector<8x128xf32>
    %33 = arith.select %30, %28, %32 : vector<8x128xi1>, vector<8x128xf32>
    %cst_12 = arith.constant dense<0.000000e+00> : vector<8x128xf32>
    %34 = vector.multi_reduction <add>, %27, %cst_12 [1] : vector<8x8x128xf32> to vector<8x128xf32>
    %35 = arith.subf %34, %33 : vector<8x128xf32>
    %cst_13 = arith.constant 0.142857149 : f32
    %36 = vector.broadcast %cst_13 : f32 to vector<8x128xf32>
    %37 = arith.mulf %35, %36 : vector<8x128xf32>
    %38 = arith.truncf %37 : vector<8x128xf32> to vector<8x128xbf16>
    %c0_14 = arith.constant 0 : index
    %c0_15 = arith.constant 0 : index
    %39 = vector.load %arg3[%c0_14, %c0_15] : memref<128x128xbf16, #tpu.memory_space<vmem>>, vector<128x128xbf16>
    %cst_16 = arith.constant dense<0.000000e+00> : vector<8x128xf32>
    %40 = tpu.matmul %38, %39, %cst_16 {dimension_numbers = #tpu.dot_dimension_numbers<[1], [0], [0], [1], [0, 0, 1, 1], [], []>} : vector<8x128xbf16>, vector<128x128xbf16>, vector<8x128xf32> -> vector<8x128xf32>
    %41 = vector.broadcast %3 : vector<1x128xf32> to vector<8x128xf32>
    %42 = arith.addf %40, %41 : vector<8x128xf32>
    %cst_17 = arith.constant 0.000000e+00 : f32
    %43 = vector.broadcast %cst_17 : f32 to vector<8x128xf32>
    %44 = arith.cmpf oge, %42, %43 : vector<8x128xf32>
    %cst_18 = arith.constant 0.00999999977 : f32
    %45 = vector.broadcast %cst_18 : f32 to vector<8x128xf32>
    %46 = arith.mulf %45, %42 : vector<8x128xf32>
    %47 = arith.select %44, %42, %46 : vector<8x128xi1>, vector<8x128xf32>
    %48 = arith.truncf %47 : vector<8x128xf32> to vector<8x128xbf16>
    %c0_19 = arith.constant 0 : index
    %c0_20 = arith.constant 0 : index
    %49 = vector.load %arg4[%c0_19, %c0_20] : memref<128x256xbf16, #tpu.memory_space<vmem>>, vector<128x256xbf16>
    %cst_21 = arith.constant dense<0.000000e+00> : vector<8x256xf32>
    %50 = tpu.matmul %48, %49, %cst_21 {dimension_numbers = #tpu.dot_dimension_numbers<[1], [0], [0], [1], [0, 0, 1, 1], [], []>} : vector<8x128xbf16>, vector<128x256xbf16>, vector<8x256xf32> -> vector<8x256xf32>
    %51 = vector.extract_strided_slice %50 {offsets = [0, 0], sizes = [8, 128], strides = [1, 1]} : vector<8x256xf32> to vector<8x128xf32>
    %52 = vector.extract_strided_slice %50 {offsets = [0, 128], sizes = [8, 128], strides = [1, 1]} : vector<8x256xf32> to vector<8x128xf32>
    %53 = vector.broadcast %4 : vector<1x128xf32> to vector<8x128xf32>
    %54 = arith.addf %52, %53 : vector<8x128xf32>
    %55 = vector.shape_cast %51 : vector<8x128xf32> to vector<8x1x128xf32>
    %56 = vector.shape_cast %54 : vector<8x128xf32> to vector<1x8x128xf32>
    %57 = vector.broadcast %55 : vector<8x1x128xf32> to vector<8x8x128xf32>
    %58 = vector.broadcast %56 : vector<1x8x128xf32> to vector<8x8x128xf32>
    %59 = arith.addf %57, %58 : vector<8x8x128xf32>
    %cst_22 = arith.constant 0.000000e+00 : f32
    %60 = vector.broadcast %cst_22 : f32 to vector<8x8x128xf32>
    %61 = arith.cmpf oge, %59, %60 : vector<8x8x128xf32>
    %cst_23 = arith.constant 0.00999999977 : f32
    %62 = vector.broadcast %cst_23 : f32 to vector<8x8x128xf32>
    %63 = arith.mulf %62, %59 : vector<8x8x128xf32>
    %64 = arith.select %61, %59, %63 : vector<8x8x128xi1>, vector<8x8x128xf32>
    %c0_24 = arith.constant 0 : index
    %c0_25 = arith.constant 0 : index
    %65 = vector.load %arg5[%c0_24, %c0_25] : memref<2x128xf32, #tpu.memory_space<vmem>>, vector<2x128xf32>
    %66 = vector.extract_strided_slice %65 {offsets = [0, 0], sizes = [1, 128], strides = [1, 1]} : vector<2x128xf32> to vector<1x128xf32>
    %67 = vector.shape_cast %66 : vector<1x128xf32> to vector<1x1x128xf32>
    %68 = vector.extract_strided_slice %65 {offsets = [1, 0], sizes = [1, 128], strides = [1, 1]} : vector<2x128xf32> to vector<1x128xf32>
    %69 = vector.shape_cast %68 : vector<1x128xf32> to vector<1x1x128xf32>
    %70 = vector.broadcast %67 : vector<1x1x128xf32> to vector<8x8x128xf32>
    %71 = arith.mulf %64, %70 : vector<8x8x128xf32>
    %72 = vector.broadcast %69 : vector<1x1x128xf32> to vector<8x8x128xf32>
    %73 = arith.mulf %27, %72 : vector<8x8x128xf32>
    %74 = arith.addf %71, %73 : vector<8x8x128xf32>
    %cst_26 = arith.constant dense<0.000000e+00> : vector<8x8xf32>
    %75 = vector.multi_reduction <add>, %74, %cst_26 [2] : vector<8x8x128xf32> to vector<8x8xf32>
    %c0_27 = arith.constant 0 : index
    %76 = memref.load %arg8[%c0_27] : memref<1xf32, #tpu.memory_space<smem>>
    %77 = vector.broadcast %76 : f32 to vector<8x8xf32>
    %78 = arith.addf %75, %77 : vector<8x8xf32>
    %79 = tpu.iota {dimensions = array<i32: 0>} : vector<8x8xi32>
    %80 = tpu.iota {dimensions = array<i32: 1>} : vector<8x8xi32>
    %81 = arith.cmpi eq, %79, %80 : vector<8x8xi32>
    %cst_28 = arith.constant 0xFF800000 : f32
    %82 = vector.broadcast %cst_28 : f32 to vector<8x8xf32>
    %83 = arith.select %81, %82, %78 : vector<8x8xi1>, vector<8x8xf32>
    %c0_29 = arith.constant 0 : index
    %c0_30 = arith.constant 0 : index
    %84 = vector.load %arg7[%c0_29, %c0_30] : memref<8x8xf32, #tpu.memory_space<vmem>>, vector<8x8xf32>
    %cst_31 = arith.constant 1.000000e-10 : f32
    %85 = vector.broadcast %cst_31 : f32 to vector<8x8xf32>
    %86 = arith.addf %84, %85 : vector<8x8xf32>
    %87 = math.log %86 : vector<8x8xf32>
    %cst_32 = arith.constant 1.000000e-10 : f32
    %88 = vector.broadcast %cst_32 : f32 to vector<8x8xf32>
    %89 = arith.subf %88, %87 : vector<8x8xf32>
    %90 = math.log %89 : vector<8x8xf32>
    %cst_33 = arith.constant 0.000000e+00 : f32
    %91 = vector.broadcast %cst_33 : f32 to vector<8x8xf32>
    %92 = arith.subf %91, %90 : vector<8x8xf32>
    %93 = arith.addf %83, %92 : vector<8x8xf32>
    %cst_34 = arith.constant 1.000000e+01 : f32
    %94 = vector.broadcast %cst_34 : f32 to vector<8x8xf32>
    %95 = arith.mulf %93, %94 : vector<8x8xf32>
    %cst_35 = arith.constant dense<0xFF800000> : vector<8xf32>
    %96 = vector.multi_reduction <maximumf>, %95, %cst_35 [1] : vector<8x8xf32> to vector<8xf32>
    %97 = vector.shape_cast %96 : vector<8xf32> to vector<8x1xf32>
    %98 = vector.broadcast %97 : vector<8x1xf32> to vector<8x8xf32>
    %99 = arith.subf %95, %98 : vector<8x8xf32>
    %100 = math.exp %99 : vector<8x8xf32>
    %cst_36 = arith.constant dense<0.000000e+00> : vector<8xf32>
    %101 = vector.multi_reduction <add>, %100, %cst_36 [1] : vector<8x8xf32> to vector<8xf32>
    %102 = vector.shape_cast %101 : vector<8xf32> to vector<8x1xf32>
    %103 = vector.broadcast %102 : vector<8x1xf32> to vector<8x8xf32>
    %104 = arith.divf %100, %103 : vector<8x8xf32>
    %c0_37 = arith.constant 0 : index
    %c0_38 = arith.constant 0 : index
    %105 = vector.load %arg9[%c0_37, %c0_38] : memref<8x8xf32, #tpu.memory_space<vmem>>, vector<8x8xf32>
    tpu.vector_store %arg9[%c0_37, %c0_38], %104 {strides = array<i32>} : memref<8x8xf32, #tpu.memory_space<vmem>>, vector<8x8xf32>,
    %cst_39 = arith.constant dense<0xFF800000> : vector<8xf32>
    %106 = vector.multi_reduction <maximumf>, %83, %cst_39 [1] : vector<8x8xf32> to vector<8xf32>
    %107 = vector.shape_cast %106 : vector<8xf32> to vector<8x1xf32>
    %108 = vector.broadcast %107 : vector<8x1xf32> to vector<8x8xf32>
    %109 = arith.subf %83, %108 : vector<8x8xf32>
    %110 = math.exp %109 : vector<8x8xf32>
    %cst_40 = arith.constant dense<0.000000e+00> : vector<8xf32>
    %111 = vector.multi_reduction <add>, %110, %cst_40 [1] : vector<8x8xf32> to vector<8xf32>
    %112 = vector.shape_cast %111 : vector<8xf32> to vector<8x1xf32>
    %113 = vector.broadcast %112 : vector<8x1xf32> to vector<8x8xf32>
    %114 = arith.divf %110, %113 : vector<8x8xf32>
    %cst_41 = arith.constant 1.000000e-16 : f32
    %115 = vector.broadcast %cst_41 : f32 to vector<8x8xf32>
    %116 = arith.addf %114, %115 : vector<8x8xf32>
    %117 = math.log %116 : vector<8x8xf32>
    %118 = arith.mulf %114, %117 : vector<8x8xf32>
    %119 = vector.shape_cast %118 : vector<8x8xf32> to vector<1x8x8xf32>
    %cst_42 = arith.constant dense<0.000000e+00> : vector<1xf32>
    %120 = vector.multi_reduction <add>, %119, %cst_42 [1, 2] : vector<1x8x8xf32> to vector<1xf32>
    %121 = vector.shape_cast %120 : vector<1xf32> to vector<1x1x1xf32>
    %122 = vector.extract %121[0, 0, 0] : f32 from vector<1x1x1xf32>
    %cst_43 = arith.constant 0.000000e+00 : f32
    %123 = arith.subf %cst_43, %122 : f32
    %cst_44 = arith.constant 1.562500e-02 : f32
    %124 = arith.mulf %123, %cst_44 : f32
    %cst_45 = arith.constant 1.000000e+00 : f32
    %125 = vector.broadcast %cst_45 : f32 to vector<1x1xf32>
    %126 = vector.broadcast %124 : f32 to vector<1x1xf32>
    %127 = arith.mulf %126, %125 : vector<1x1xf32>
    %c0_46 = arith.constant 0 : index
    %c0_47 = arith.constant 0 : index
    %128 = vector.load %arg10[%c0_46, %c0_47] : memref<1x1xf32, #tpu.memory_space<vmem>>, vector<1x1xf32>
    tpu.vector_store %arg10[%c0_46, %c0_47], %127 {strides = array<i32>} : memref<1x1xf32, #tpu.memory_space<vmem>>, vector<1x1xf32>,
    return
  }
}

</mosaic_0001>

<llo_original>
// kernel: graph_learning_forward.1
$region0: #{graph_learning_forward.1}
  #allocation0 [shape = 'u32[]', space=smem, size = 0x4, offset = 0x4, fixed_abs, tag = 'smem constant byte address 0x4 - core index']
  #allocation1 [shape = 'u32[72,128]{1,0:T(1,128)}', space=vmem, size = 0x9000, scoped, tag = 'internal scratch']
  #allocation2 [shape = 'f32[1]{0:T(128)S(6)}', space=smem, size = 0x200, scoped, tag = 'scoped memory for graph_learning_forward.1']
  %s0 = inlined_call_operand.vmem [shape: f32[8,16], index: 0, kind: input, shape index: {}]
  %s1 = inlined_call_operand.vmem [shape: bf16[16,128], index: 1, kind: input, shape index: {}]
  %s2 = inlined_call_operand.vmem [shape: bf16[128,256], index: 2, kind: input, shape index: {}]
  %s3 = inlined_call_operand.vmem [shape: bf16[128,128], index: 3, kind: input, shape index: {}]
  %s4 = inlined_call_operand.vmem [shape: bf16[128,256], index: 4, kind: input, shape index: {}]
  %s5 = inlined_call_operand.vmem [shape: f32[2,128], index: 5, kind: input, shape index: {}]
  %s6 = inlined_call_operand.vmem [shape: f32[4,128], index: 6, kind: input, shape index: {}]
  %s7 = inlined_call_operand.vmem [shape: f32[8,8], index: 7, kind: input, shape index: {}]
  %s8 = inlined_call_operand.<no memory space> [shape: f32[1], index: 8, kind: input, shape index: {}]
  %s9 = inlined_call_operand.vmem [shape: f32[8,8], index: 9, kind: output, shape index: {0}]
  %s10 = inlined_call_operand.hbm [shape: f32[1,1], index: 10, kind: output, shape index: {1}]
  %11 = xla_tuple %s9, %s10
  %s12 = sld [smem:[#allocation0]]
  $region54: #{graph_learning_forward.1} parent=0
    _
  %s14 = ssub.s32 1, %s12
  %s15 = scalar_select 0, %s14, %s12
  %16 = sst [smem:[#allocation2]] %s8
  $region1: #{graph_learning_forward.1} parent=0
    #allocation3 [shape = 'u8[512]{0}', space=vmem, size = 0x400, scoped, tag = 'output window, operand 1, single buffered']
    #allocation4 [shape = 's32[1]{0}', space=sflag, size = 0x4, scoped, tag = 'scoped memory for graph_learning_forward.1']
    %17 = vsyncpa [#allocation4], 0
    // Predicated region
    $region2: #{graph_learning_forward.1} parent=1 // pred_check
      _
    $region3: #{graph_learning_forward.1} parent=1 // pred_check_branch
      %19 = sbr.rel (0) target = $region5
    $region4: #{graph_learning_forward.1} parent=1 // pred_region
      _
    $region5: #{graph_learning_forward.1} parent=1 // pred_fallthru
      _
    // Predicated region
    $region6: #{graph_learning_forward.1} parent=1 // pred_check
      _
    $region7: #{graph_learning_forward.1} parent=1 // pred_check_branch
      %21 = sbr.rel (0) target = $region9
    $region8: #{graph_learning_forward.1} parent=1 // pred_region
      _
    $region9: #{graph_learning_forward.1} parent=1 // pred_fallthru
      _
    // Predicated region
    $region10: #{graph_learning_forward.1} parent=1 // pred_check
      _
    $region11: #{graph_learning_forward.1} parent=1 // pred_check_branch
      %23 = sbr.rel (0) target = $region13
    $region12: #{graph_learning_forward.1} parent=1 // pred_region
      _
    $region13: #{graph_learning_forward.1} parent=1 // pred_fallthru
      _
    // Predicated region
    $region14: #{graph_learning_forward.1} parent=1 // pred_check
      _
    $region15: #{graph_learning_forward.1} parent=1 // pred_check_branch
      %25 = sbr.rel (0) target = $region17
    $region16: #{graph_learning_forward.1} parent=1 // pred_region
      _
    $region17: #{graph_learning_forward.1} parent=1 // pred_fallthru
      _
    // Predicated region
    $region18: #{graph_learning_forward.1} parent=1 // pred_check
      _
    $region19: #{graph_learning_forward.1} parent=1 // pred_check_branch
      %27 = sbr.rel (0) target = $region21
    $region20: #{graph_learning_forward.1} parent=1 // pred_region
      _
    $region21: #{graph_learning_forward.1} parent=1 // pred_fallthru
      _
    // Predicated region
    $region22: #{graph_learning_forward.1} parent=1 // pred_check
      _
    $region23: #{graph_learning_forward.1} parent=1 // pred_check_branch
      %29 = sbr.rel (0) target = $region25
    $region24: #{graph_learning_forward.1} parent=1 // pred_region
      _
    $region25: #{graph_learning_forward.1} parent=1 // pred_fallthru
      _
    // Predicated region
    $region26: #{graph_learning_forward.1} parent=1 // pred_check
      _
    $region27: #{graph_learning_forward.1} parent=1 // pred_check_branch
      %31 = sbr.rel (0) target = $region29
    $region28: #{graph_learning_forward.1} parent=1 // pred_region
      _
    $region29: #{graph_learning_forward.1} parent=1 // pred_fallthru
      _
    // Predicated region
    $region30: #{graph_learning_forward.1} parent=1 // pred_check
      _
    $region31: #{graph_learning_forward.1} parent=1 // pred_check_branch
      %33 = sbr.rel (0) target = $region33
    $region32: #{graph_learning_forward.1} parent=1 // pred_region
      _
    $region33: #{graph_learning_forward.1} parent=1 // pred_fallthru
      _
    // Predicated region
    $region34: #{graph_learning_forward.1} parent=1 // pred_check
      _
    $region35: #{graph_learning_forward.1} parent=1 // pred_check_branch
      %35 = sbr.rel (0) target = $region37
    $region36: #{graph_learning_forward.1} parent=1 // pred_region
      _
    $region37: #{graph_learning_forward.1} parent=1 // pred_fallthru
      _
    %v37 = vld [vmem:[%s6] sm:$0xf]
    %v38 = vld [vmem:[%s0] sm:$0xff]
    %v39 = vpack.c.bf16 %v38, %v38
    %v40 = vld [vmem:[%s1] sm:$0xf]
    %v41 = vld [vmem:[%s1 + $0x4] sm:$0xf]
    %v42 = vperm.slane %v37, 0
    %v45 = vunpack.c.l.b16 %v40
    %v46 = vunpack.c.l.b16 %v41
    %v47 = vpack.c.b16 %v46, %v45
    %vm49 = vcmask 130048
    %v51 = vsel %vm49, %v39, 0
    %53 = vmatpush.bf16.msra.mxu0 0
    %54 = vmatpush.bf16.msra.mxu0 0
    %55 = vmatpush.bf16.msra.mxu0 0
    %56 = vmatpush.bf16.msra.mxu0 0
    %57 = vmatpush.bf16.msra.mxu0 0
    %58 = vmatpush.bf16.msra.mxu0 0
    %59 = vmatpush.bf16.msra.mxu0 0
    %60 = vmatpush.bf16.msra.mxu0 %v47
    %61 = vmatmul.bf16.gmra.mxu0 %v51
    %v62 = vpop.f32.mrf.mxu0
    %v63 = vadd.f32 %v42, %v62
    %v64 = vpop.f32.mrf.mxu0
    %65 = vdwg.mxu0
    %v66 = vpack.c.bf16 %v63, %v63
    %v67 = vld [vmem:[%s2] sm:$0xff]
    %v68 = vld [vmem:[%s2 + $0x8] sm:$0xff]
    %v69 = vld [vmem:[%s2 + $0x10] sm:$0xff]
    %v70 = vld [vmem:[%s2 + $0x18] sm:$0xff]
    %v71 = vld [vmem:[%s2 + $0x20] sm:$0xff]
    %v72 = vld [vmem:[%s2 + $0x28] sm:$0xff]
    %v73 = vld [vmem:[%s2 + $0x30] sm:$0xff]
    %v74 = vld [vmem:[%s2 + $0x38] sm:$0xff]
    %v75 = vld [vmem:[%s2 + $0x40] sm:$0xff]
    %v76 = vld [vmem:[%s2 + $0x48] sm:$0xff]
    %v77 = vld [vmem:[%s2 + $0x50] sm:$0xff]
    %v78 = vld [vmem:[%s2 + $0x58] sm:$0xff]
    %v79 = vld [vmem:[%s2 + $0x60] sm:$0xff]
    %v80 = vld [vmem:[%s2 + $0x68] sm:$0xff]
    %v81 = vld [vmem:[%s2 + $0x70] sm:$0xff]
    %v82 = vld [vmem:[%s2 + $0x78] sm:$0xff]
    %v99 = vunpack.c.l.b16 %v67
    %v100 = vunpack.c.h.b16 %v67
    %v101 = vunpack.c.l.b16 %v68
    %v102 = vunpack.c.h.b16 %v68
    %v103 = vunpack.c.l.b16 %v69
    %v104 = vunpack.c.h.b16 %v69
    %v105 = vunpack.c.l.b16 %v70
    %v106 = vunpack.c.h.b16 %v70
    %v107 = vunpack.c.l.b16 %v71
    %v108 = vunpack.c.h.b16 %v71
    %v109 = vunpack.c.l.b16 %v72
    %v110 = vunpack.c.h.b16 %v72
    %v111 = vunpack.c.l.b16 %v73
    %v112 = vunpack.c.h.b16 %v73
    %v113 = vunpack.c.l.b16 %v74
    %v114 = vunpack.c.h.b16 %v74
    %v115 = vunpack.c.l.b16 %v75
    %v116 = vunpack.c.h.b16 %v75
    %v117 = vunpack.c.l.b16 %v76
    %v118 = vunpack.c.h.b16 %v76
    %v119 = vunpack.c.l.b16 %v77
    %v120 = vunpack.c.h.b16 %v77
    %v121 = vunpack.c.l.b16 %v78
    %v122 = vunpack.c.h.b16 %v78
    %v123 = vunpack.c.l.b16 %v79
    %v124 = vunpack.c.h.b16 %v79
    %v125 = vunpack.c.l.b16 %v80
    %v126 = vunpack.c.h.b16 %v80
    %v127 = vunpack.c.l.b16 %v81
    %v128 = vunpack.c.h.b16 %v81
    %v129 = vunpack.c.l.b16 %v82
    %v130 = vunpack.c.h.b16 %v82
    %v131 = vpack.c.b16 %v101, %v99
    %v132 = vpack.c.b16 %v102, %v100
    %v133 = vpack.c.b16 %v105, %v103
    %v134 = vpack.c.b16 %v106, %v104
    %v135 = vpack.c.b16 %v109, %v107
    %v136 = vpack.c.b16 %v110, %v108
    %v137 = vpack.c.b16 %v113, %v111
    %v138 = vpack.c.b16 %v114, %v112
    %v139 = vpack.c.b16 %v117, %v115
    %v140 = vpack.c.b16 %v118, %v116
    %v141 = vpack.c.b16 %v121, %v119
    %v142 = vpack.c.b16 %v122, %v120
    %v143 = vpack.c.b16 %v125, %v123
    %v144 = vpack.c.b16 %v126, %v124
    %v145 = vpack.c.b16 %v129, %v127
    %v146 = vpack.c.b16 %v130, %v128
    %163 = vmatpush.bf16.msra.mxu0 %v145
    %164 = vmatpush.bf16.msra.mxu0 %v143
    %165 = vmatpush.bf16.msra.mxu0 %v141
    %166 = vmatpush.bf16.msra.mxu0 %v139
    %167 = vmatpush.bf16.msra.mxu0 %v137
    %168 = vmatpush.bf16.msra.mxu0 %v135
    %169 = vmatpush.bf16.msra.mxu0 %v133
    %170 = vmatpush.bf16.msra.mxu0 %v131
    %171 = vmatmul.bf16.gmra.mxu0 %v66
    %v172 = vpop.f32.mrf.mxu0
    %v173 = vadd.f32 0.0, %v172
    %v174 = vpop.f32.mrf.mxu0
    %175 = vdwg.mxu0
    %176 = vmatpush.bf16.msra.mxu0 %v146
    %177 = vmatpush.bf16.msra.mxu0 %v144
    %178 = vmatpush.bf16.msra.mxu0 %v142
    %179 = vmatpush.bf16.msra.mxu0 %v140
    %180 = vmatpush.bf16.msra.mxu0 %v138
    %181 = vmatpush.bf16.msra.mxu0 %v136
    %182 = vmatpush.bf16.msra.mxu0 %v134
    %183 = vmatpush.bf16.msra.mxu0 %v132
    %184 = vmatmul.bf16.gmra.mxu0 %v66
    %v185 = vpop.f32.mrf.mxu0
    %v186 = vadd.f32 0.0, %v185
    %v187 = vpop.f32.mrf.mxu0
    %188 = vdwg.mxu0
    %v189 = vperm.slane %v37, 1
    %v190 = vadd.f32 %v186, %v189
    %v192 = vrot.slane %v173, 1
    %v193 = vrot.slane %v173, 2
    %v194 = vrot.slane %v173, 3
    %v195 = vrot.slane %v173, 4
    %v196 = vrot.slane %v173, 5
    %v197 = vrot.slane %v173, 6
    %v198 = vrot.slane %v173, 7
    %v199 = vperm.slane %v173, 0
    %v200 = vperm.slane %v192, 0
    %v201 = vperm.slane %v193, 0
    %v202 = vperm.slane %v194, 0
    %v203 = vperm.slane %v195, 0
    %v204 = vperm.slane %v196, 0
    %v205 = vperm.slane %v197, 0
    %v206 = vperm.slane %v198, 0
    %v215 = vadd.f32 %v199, %v190
    %v216 = vadd.f32 %v200, %v190
    %v217 = vadd.f32 %v201, %v190
    %v218 = vadd.f32 %v202, %v190
    %v219 = vadd.f32 %v203, %v190
    %v220 = vadd.f32 %v204, %v190
    %v221 = vadd.f32 %v205, %v190
    %v222 = vadd.f32 %v206, %v190
    %vm223 = vcmp.ge.f32.partialorder %v215, 0.0
    %vm224 = vcmp.ge.f32.partialorder %v216, 0.0
    %vm225 = vcmp.ge.f32.partialorder %v217, 0.0
    %vm226 = vcmp.ge.f32.partialorder %v218, 0.0
    %vm227 = vcmp.ge.f32.partialorder %v219, 0.0
    %vm228 = vcmp.ge.f32.partialorder %v220, 0.0
    %vm229 = vcmp.ge.f32.partialorder %v221, 0.0
    %vm230 = vcmp.ge.f32.partialorder %v222, 0.0
    %v231 = vmul.f32 %v215, 0.01
    %v232 = vmul.f32 %v216, 0.01
    %v233 = vmul.f32 %v217, 0.01
    %v234 = vmul.f32 %v218, 0.01
    %v235 = vmul.f32 %v219, 0.01
    %v236 = vmul.f32 %v220, 0.01
    %v237 = vmul.f32 %v221, 0.01
    %v238 = vmul.f32 %v222, 0.01
    %v239 = vsel %vm223, %v215, %v231
    %v240 = vsel %vm224, %v216, %v232
    %v241 = vsel %vm225, %v217, %v233
    %v242 = vsel %vm226, %v218, %v234
    %v243 = vsel %vm227, %v219, %v235
    %v244 = vsel %vm228, %v220, %v236
    %v245 = vsel %vm229, %v221, %v237
    %v246 = vsel %vm230, %v222, %v238
    %v247 = vadd.f32 %v173, %v190
    %vm248 = vcmp.ge.f32.partialorder %v247, 0.0
    %v249 = vmul.f32 %v247, 0.01
    %v250 = vsel %vm248, %v247, %v249
    %v251 = vrot.slane %v239, 4
    %v252 = vadd.f32 %v239, %v251
    %v253 = vrot.slane %v252, 2
    %v254 = vadd.f32 %v252, %v253
    %v255 = vrot.slane %v254, 1
    %v256 = vadd.f32 %v254, %v255
    %v257 = vrot.slane %v240, 4
    %v258 = vadd.f32 %v240, %v257
    %v259 = vrot.slane %v258, 2
    %v260 = vadd.f32 %v258, %v259
    %v261 = vrot.slane %v260, 1
    %v262 = vadd.f32 %v260, %v261
    %v263 = vrot.slane %v241, 4
    %v264 = vadd.f32 %v241, %v263
    %v265 = vrot.slane %v264, 2
    %v266 = vadd.f32 %v264, %v265
    %v267 = vrot.slane %v266, 1
    %v268 = vadd.f32 %v266, %v267
    %v269 = vrot.slane %v242, 4
    %v270 = vadd.f32 %v242, %v269
    %v271 = vrot.slane %v270, 2
    %v272 = vadd.f32 %v270, %v271
    %v273 = vrot.slane %v272, 1
    %v274 = vadd.f32 %v272, %v273
    %v275 = vrot.slane %v243, 4
    %v276 = vadd.f32 %v243, %v275
    %v277 = vrot.slane %v276, 2
    %v278 = vadd.f32 %v276, %v277
    %v279 = vrot.slane %v278, 1
    %v280 = vadd.f32 %v278, %v279
    %v281 = vrot.slane %v244, 4
    %v282 = vadd.f32 %v244, %v281
    %v283 = vrot.slane %v282, 2
    %v284 = vadd.f32 %v282, %v283
    %v285 = vrot.slane %v284, 1
    %v286 = vadd.f32 %v284, %v285
    %v287 = vrot.slane %v245, 4
    %v288 = vadd.f32 %v245, %v287
    %v289 = vrot.slane %v288, 2
    %v290 = vadd.f32 %v288, %v289
    %v291 = vrot.slane %v290, 1
    %v292 = vadd.f32 %v290, %v291
    %v293 = vrot.slane %v246, 4
    %v294 = vadd.f32 %v246, %v293
    %v295 = vrot.slane %v294, 2
    %v296 = vadd.f32 %v294, %v295
    %v297 = vrot.slane %v296, 1
    %v298 = vadd.f32 %v296, %v297
    %v300 = vrot.slane %v250, 1
    %v301 = vrot.slane %v250, 2
    %v302 = vrot.slane %v250, 3
    %v303 = vrot.slane %v250, 4
    %v304 = vrot.slane %v250, 5
    %v305 = vrot.slane %v250, 6
    %v306 = vrot.slane %v250, 7
    %v315 = vsub.f32 %v256, %v250
    %v316 = vsub.f32 %v262, %v300
    %v317 = vsub.f32 %v268, %v301
    %v318 = vsub.f32 %v274, %v302
    %v319 = vsub.f32 %v280, %v303
    %v320 = vsub.f32 %v286, %v304
    %v321 = vsub.f32 %v292, %v305
    %v322 = vsub.f32 %v298, %v306
    %v323 = vmul.f32 %v315, 0.14285715
    %v324 = vmul.f32 %v316, 0.14285715
    %v325 = vmul.f32 %v317, 0.14285715
    %v326 = vmul.f32 %v318, 0.14285715
    %v327 = vmul.f32 %v319, 0.14285715
    %v328 = vmul.f32 %v320, 0.14285715
    %v329 = vmul.f32 %v321, 0.14285715
    %v330 = vmul.f32 %v322, 0.14285715
    %v331 = vpack.c.bf16 %v323, %v323
    %v332 = vpack.c.bf16 %v324, %v324
    %v333 = vpack.c.bf16 %v325, %v325
    %v334 = vpack.c.bf16 %v326, %v326
    %v335 = vpack.c.bf16 %v327, %v327
    %v336 = vpack.c.bf16 %v328, %v328
    %v337 = vpack.c.bf16 %v329, %v329
    %v338 = vpack.c.bf16 %v330, %v330
    %v339 = vld [vmem:[%s3] sm:$0xf]
    %v340 = vld [vmem:[%s3 + $0x4] sm:$0xf]
    %v341 = vld [vmem:[%s3 + $0x8] sm:$0xf]
    %v342 = vld [vmem:[%s3 + $0xc] sm:$0xf]
    %v343 = vld [vmem:[%s3 + $0x10] sm:$0xf]
    %v344 = vld [vmem:[%s3 + $0x14] sm:$0xf]
    %v345 = vld [vmem:[%s3 + $0x18] sm:$0xf]
    %v346 = vld [vmem:[%s3 + $0x1c] sm:$0xf]
    %v347 = vld [vmem:[%s3 + $0x20] sm:$0xf]
    %v348 = vld [vmem:[%s3 + $0x24] sm:$0xf]
    %v349 = vld [vmem:[%s3 + $0x28] sm:$0xf]
    %v350 = vld [vmem:[%s3 + $0x2c] sm:$0xf]
    %v351 = vld [vmem:[%s3 + $0x30] sm:$0xf]
    %v352 = vld [vmem:[%s3 + $0x34] sm:$0xf]
    %v353 = vld [vmem:[%s3 + $0x38] sm:$0xf]
    %v354 = vld [vmem:[%s3 + $0x3c] sm:$0xf]
    %v355 = vperm.slane %v37, 2
    %v364 = vunpack.c.l.b16 %v331
    %v365 = vunpack.c.l.b16 %v332
    %v366 = vunpack.c.l.b16 %v333
    %v367 = vunpack.c.l.b16 %v334
    %v368 = vunpack.c.l.b16 %v335
    %v369 = vunpack.c.l.b16 %v336
    %v370 = vunpack.c.l.b16 %v337
    %v371 = vunpack.c.l.b16 %v338
    %v372 = vrot.slane %v365, 7
    %vm373 = vcmask 1041409
    %v374 = vsel %vm373, %v372, %v364
    %v375 = vrot.slane %v366, 6
    %vm376 = vcmask 1042434
    %v377 = vsel %vm376, %v375, %v374
    %v378 = vrot.slane %v367, 5
    %vm379 = vcmask 1043459
    %v380 = vsel %vm379, %v378, %v377
    %v381 = vrot.slane %v368, 4
    %vm382 = vcmask 1044484
    %v383 = vsel %vm382, %v381, %v380
    %v384 = vrot.slane %v369, 3
    %vm385 = vcmask 1045509
    %v386 = vsel %vm385, %v384, %v383
    %v387 = vrot.slane %v370, 2
    %vm388 = vcmask 1046534
    %v389 = vsel %vm388, %v387, %v386
    %v390 = vrot.slane %v371, 1
    %vm391 = vcmask 1047559
    %v392 = vsel %vm391, %v390, %v389
    %v393 = vpack.c.b16 %v392, %v392
    %v411 = vunpack.c.l.b16 %v339
    %v412 = vunpack.c.l.b16 %v340
    %v413 = vunpack.c.l.b16 %v341
    %v414 = vunpack.c.l.b16 %v342
    %v415 = vunpack.c.l.b16 %v343
    %v416 = vunpack.c.l.b16 %v344
    %v417 = vunpack.c.l.b16 %v345
    %v418 = vunpack.c.l.b16 %v346
    %v419 = vunpack.c.l.b16 %v347
    %v420 = vunpack.c.l.b16 %v348
    %v421 = vunpack.c.l.b16 %v349
    %v422 = vunpack.c.l.b16 %v350
    %v423 = vunpack.c.l.b16 %v351
    %v424 = vunpack.c.l.b16 %v352
    %v425 = vunpack.c.l.b16 %v353
    %v426 = vunpack.c.l.b16 %v354
    %v427 = vpack.c.b16 %v412, %v411
    %v428 = vpack.c.b16 %v414, %v413
    %v429 = vpack.c.b16 %v416, %v415
    %v430 = vpack.c.b16 %v418, %v417
    %v431 = vpack.c.b16 %v420, %v419
    %v432 = vpack.c.b16 %v422, %v421
    %v433 = vpack.c.b16 %v424, %v423
    %v434 = vpack.c.b16 %v426, %v425
    %443 = vmatpush.bf16.msra.mxu0 %v434
    %444 = vmatpush.bf16.msra.mxu0 %v433
    %445 = vmatpush.bf16.msra.mxu0 %v432
    %446 = vmatpush.bf16.msra.mxu0 %v431
    %447 = vmatpush.bf16.msra.mxu0 %v430
    %448 = vmatpush.bf16.msra.mxu0 %v429
    %449 = vmatpush.bf16.msra.mxu0 %v428
    %450 = vmatpush.bf16.msra.mxu0 %v427
    %451 = vmatmul.bf16.gmra.mxu0 %v393
    %v452 = vpop.f32.mrf.mxu0
    %v453 = vadd.f32 %v355, %v452
    %v454 = vpop.f32.mrf.mxu0
    %455 = vdwg.mxu0
    %vm456 = vcmp.ge.f32.partialorder %v453, 0.0
    %v457 = vmul.f32 %v453, 0.01
    %v458 = vsel %vm456, %v453, %v457
    %v459 = vpack.c.bf16 %v458, %v458
    %v460 = vld [vmem:[%s4] sm:$0xff]
    %v461 = vld [vmem:[%s4 + $0x8] sm:$0xff]
    %v462 = vld [vmem:[%s4 + $0x10] sm:$0xff]
    %v463 = vld [vmem:[%s4 + $0x18] sm:$0xff]
    %v464 = vld [vmem:[%s4 + $0x20] sm:$0xff]
    %v465 = vld [vmem:[%s4 + $0x28] sm:$0xff]
    %v466 = vld [vmem:[%s4 + $0x30] sm:$0xff]
    %v467 = vld [vmem:[%s4 + $0x38] sm:$0xff]
    %v468 = vld [vmem:[%s4 + $0x40] sm:$0xff]
    %v469 = vld [vmem:[%s4 + $0x48] sm:$0xff]
    %v470 = vld [vmem:[%s4 + $0x50] sm:$0xff]
    %v471 = vld [vmem:[%s4 + $0x58] sm:$0xff]
    %v472 = vld [vmem:[%s4 + $0x60] sm:$0xff]
    %v473 = vld [vmem:[%s4 + $0x68] sm:$0xff]
    %v474 = vld [vmem:[%s4 + $0x70] sm:$0xff]
    %v475 = vld [vmem:[%s4 + $0x78] sm:$0xff]
    %v492 = vunpack.c.l.b16 %v460
    %v493 = vunpack.c.h.b16 %v460
    %v494 = vunpack.c.l.b16 %v461
    %v495 = vunpack.c.h.b16 %v461
    %v496 = vunpack.c.l.b16 %v462
    %v497 = vunpack.c.h.b16 %v462
    %v498 = vunpack.c.l.b16 %v463
    %v499 = vunpack.c.h.b16 %v463
    %v500 = vunpack.c.l.b16 %v464
    %v501 = vunpack.c.h.b16 %v464
    %v502 = vunpack.c.l.b16 %v465
    %v503 = vunpack.c.h.b16 %v465
    %v504 = vunpack.c.l.b16 %v466
    %v505 = vunpack.c.h.b16 %v466
    %v506 = vunpack.c.l.b16 %v467
    %v507 = vunpack.c.h.b16 %v467
    %v508 = vunpack.c.l.b16 %v468
    %v509 = vunpack.c.h.b16 %v468
    %v510 = vunpack.c.l.b16 %v469
    %v511 = vunpack.c.h.b16 %v469
    %v512 = vunpack.c.l.b16 %v470
    %v513 = vunpack.c.h.b16 %v470
    %v514 = vunpack.c.l.b16 %v471
    %v515 = vunpack.c.h.b16 %v471
    %v516 = vunpack.c.l.b16 %v472
    %v517 = vunpack.c.h.b16 %v472
    %v518 = vunpack.c.l.b16 %v473
    %v519 = vunpack.c.h.b16 %v473
    %v520 = vunpack.c.l.b16 %v474
    %v521 = vunpack.c.h.b16 %v474
    %v522 = vunpack.c.l.b16 %v475
    %v523 = vunpack.c.h.b16 %v475
    %v524 = vpack.c.b16 %v494, %v492
    %v525 = vpack.c.b16 %v495, %v493
    %v526 = vpack.c.b16 %v498, %v496
    %v527 = vpack.c.b16 %v499, %v497
    %v528 = vpack.c.b16 %v502, %v500
    %v529 = vpack.c.b16 %v503, %v501
    %v530 = vpack.c.b16 %v506, %v504
    %v531 = vpack.c.b16 %v507, %v505
    %v532 = vpack.c.b16 %v510, %v508
    %v533 = vpack.c.b16 %v511, %v509
    %v534 = vpack.c.b16 %v514, %v512
    %v535 = vpack.c.b16 %v515, %v513
    %v536 = vpack.c.b16 %v518, %v516
    %v537 = vpack.c.b16 %v519, %v517
    %v538 = vpack.c.b16 %v522, %v520
    %v539 = vpack.c.b16 %v523, %v521
    %556 = vmatpush.bf16.msra.mxu0 %v538
    %557 = vmatpush.bf16.msra.mxu0 %v536
    %558 = vmatpush.bf16.msra.mxu0 %v534
    %559 = vmatpush.bf16.msra.mxu0 %v532
    %560 = vmatpush.bf16.msra.mxu0 %v530
    %561 = vmatpush.bf16.msra.mxu0 %v528
    %562 = vmatpush.bf16.msra.mxu0 %v526
    %563 = vmatpush.bf16.msra.mxu0 %v524
    %564 = vmatmul.bf16.gmra.mxu0 %v459
    %v565 = vpop.f32.mrf.mxu0
    %v566 = vadd.f32 0.0, %v565
    %v567 = vpop.f32.mrf.mxu0
    %568 = vdwg.mxu0
    %569 = vmatpush.bf16.msra.mxu0 %v539
    %570 = vmatpush.bf16.msra.mxu0 %v537
    %571 = vmatpush.bf16.msra.mxu0 %v535
    %572 = vmatpush.bf16.msra.mxu0 %v533
    %573 = vmatpush.bf16.msra.mxu0 %v531
    %574 = vmatpush.bf16.msra.mxu0 %v529
    %575 = vmatpush.bf16.msra.mxu0 %v527
    %576 = vmatpush.bf16.msra.mxu0 %v525
    %577 = vmatmul.bf16.gmra.mxu0 %v459
    %v578 = vpop.f32.mrf.mxu0
    %v579 = vadd.f32 0.0, %v578
    %v580 = vpop.f32.mrf.mxu0
    %581 = vdwg.mxu0
    %v582 = vperm.slane %v37, 3
    %v583 = vadd.f32 %v579, %v582
    %v585 = vrot.slane %v566, 1
    %v586 = vrot.slane %v566, 2
    %v587 = vrot.slane %v566, 3
    %v588 = vrot.slane %v566, 4
    %v589 = vrot.slane %v566, 5
    %v590 = vrot.slane %v566, 6
    %v591 = vrot.slane %v566, 7
    %v592 = vperm.slane %v566, 0
    %v593 = vperm.slane %v585, 0
    %v594 = vperm.slane %v586, 0
    %v595 = vperm.slane %v587, 0
    %v596 = vperm.slane %v588, 0
    %v597 = vperm.slane %v589, 0
    %v598 = vperm.slane %v590, 0
    %v599 = vperm.slane %v591, 0
    %v608 = vadd.f32 %v592, %v583
    %v609 = vadd.f32 %v593, %v583
    %v610 = vadd.f32 %v594, %v583
    %v611 = vadd.f32 %v595, %v583
    %v612 = vadd.f32 %v596, %v583
    %v613 = vadd.f32 %v597, %v583
    %v614 = vadd.f32 %v598, %v583
    %v615 = vadd.f32 %v599, %v583
    %vm616 = vcmp.ge.f32.partialorder %v608, 0.0
    %vm617 = vcmp.ge.f32.partialorder %v609, 0.0
    %vm618 = vcmp.ge.f32.partialorder %v610, 0.0
    %vm619 = vcmp.ge.f32.partialorder %v611, 0.0
    %vm620 = vcmp.ge.f32.partialorder %v612, 0.0
    %vm621 = vcmp.ge.f32.partialorder %v613, 0.0
    %vm622 = vcmp.ge.f32.partialorder %v614, 0.0
    %vm623 = vcmp.ge.f32.partialorder %v615, 0.0
    %v624 = vmul.f32 %v608, 0.01
    %v625 = vmul.f32 %v609, 0.01
    %v626 = vmul.f32 %v610, 0.01
    %v627 = vmul.f32 %v611, 0.01
    %v628 = vmul.f32 %v612, 0.01
    %v629 = vmul.f32 %v613, 0.01
    %v630 = vmul.f32 %v614, 0.01
    %v631 = vmul.f32 %v615, 0.01
    %v632 = vsel %vm616, %v608, %v624
    %v633 = vsel %vm617, %v609, %v625
    %v634 = vsel %vm618, %v610, %v626
    %v635 = vsel %vm619, %v611, %v627
    %v636 = vsel %vm620, %v612, %v628
    %v637 = vsel %vm621, %v613, %v629
    %v638 = vsel %vm622, %v614, %v630
    %v639 = vsel %vm623, %v615, %v631
    %v640 = vld [vmem:[%s5] sm:$0x3]
    %v641 = vperm.slane %v640, 0
    %v642 = vmul.f32 %v632, %v641
    %v643 = vmul.f32 %v633, %v641
    %v644 = vmul.f32 %v634, %v641
    %v645 = vmul.f32 %v635, %v641
    %v646 = vmul.f32 %v636, %v641
    %v647 = vmul.f32 %v637, %v641
    %v648 = vmul.f32 %v638, %v641
    %v649 = vmul.f32 %v639, %v641
    %v650 = vperm.slane %v640, 1
    %v651 = vmul.f32 %v239, %v650
    %v652 = vmul.f32 %v240, %v650
    %v653 = vmul.f32 %v241, %v650
    %v654 = vmul.f32 %v242, %v650
    %v655 = vmul.f32 %v243, %v650
    %v656 = vmul.f32 %v244, %v650
    %v657 = vmul.f32 %v245, %v650
    %v658 = vmul.f32 %v246, %v650
    %v659 = vadd.f32 %v642, %v651
    %v660 = vadd.f32 %v643, %v652
    %v661 = vadd.f32 %v644, %v653
    %v662 = vadd.f32 %v645, %v654
    %v663 = vadd.f32 %v646, %v655
    %v664 = vadd.f32 %v647, %v656
    %v665 = vadd.f32 %v648, %v657
    %v666 = vadd.f32 %v649, %v658
    %667 = vadd.xlane.f32.xlu0 %v659
    %v668 = vpop.xlane.xlu0 %667
    %669 = vadd.xlane.f32.xlu0 %v660
    %v670 = vpop.xlane.xlu0 %669
    %671 = vadd.xlane.f32.xlu0 %v661
    %v672 = vpop.xlane.xlu0 %671
    %673 = vadd.xlane.f32.xlu0 %v662
    %v674 = vpop.xlane.xlu0 %673
    %675 = vadd.xlane.f32.xlu0 %v663
    %v676 = vpop.xlane.xlu0 %675
    %677 = vadd.xlane.f32.xlu0 %v664
    %v678 = vpop.xlane.xlu0 %677
    %679 = vadd.xlane.f32.xlu0 %v665
    %v680 = vpop.xlane.xlu0 %679
    %681 = vadd.xlane.f32.xlu0 %v666
    %v682 = vpop.xlane.xlu0 %681
    %s683 = sld [smem:[#allocation2]]
    %v684 = vstv %s683
    %v685 = vadd.f32 %v668, %v684
    %v686 = vadd.f32 %v670, %v684
    %v687 = vadd.f32 %v672, %v684
    %v688 = vadd.f32 %v674, %v684
    %v689 = vadd.f32 %v676, %v684
    %v690 = vadd.f32 %v678, %v684
    %v691 = vadd.f32 %v680, %v684
    %v692 = vadd.f32 %v682, %v684
    %v693 = vlaneseq
    %v694 = vshrl.u32 %v693, 7
    %v695 = vlaneseq
    %v696 = vand.u32 %v695, 127
    %vm697 = vcmp.eq.s32.totalorder %v694, %v696
    %v706 = vperm.slane %v685, %v696
    %v707 = vperm.slane %v686, %v696
    %v708 = vperm.slane %v687, %v696
    %v709 = vperm.slane %v688, %v696
    %v710 = vperm.slane %v689, %v696
    %v711 = vperm.slane %v690, %v696
    %v712 = vperm.slane %v691, %v696
    %v713 = vperm.slane %v692, %v696
    %v714 = vsel %vm373, %v707, %v706
    %v715 = vsel %vm376, %v708, %v714
    %v716 = vsel %vm379, %v709, %v715
    %v717 = vsel %vm382, %v710, %v716
    %v718 = vsel %vm385, %v711, %v717
    %v719 = vsel %vm388, %v712, %v718
    %v720 = vsel %vm391, %v713, %v719
    %v722 = vsel %vm697, -inf, %v720
    %v723 = vld [vmem:[%s7] sm:$0xff]
    %v724 = vadd.f32 %v723, 1e-10
    %v725 = vlog2.pop %v724
    %v726 = vmul.f32 %v725, 0.6931472
    %v727 = vsub.f32 1e-10, %v726
    %v728 = vlog2.pop %v727
    %v729 = vmul.f32 %v728, 0.6931472
    %v730 = vsub.f32 0.0, %v729
    %v731 = vadd.f32 %v722, %v730
    %v732 = vmul.f32 %v731, 10.0
    %vm733 = vcmask 64512
    %v734 = vsel %vm733, %v732, -inf
    %735 = vmax.xlane.f32.xlu0 %v734
    %v736 = vpop.xlane.xlu0 %735
    %v737 = vsub.f32 %v732, %v736
    %v738 = vmul.f32 %v737, 1.442695
    %v739 = vpow.pop %v738
    %v740 = vsel %vm733, %v739, 0.0
    %741 = vadd.xlane.f32.xlu0 %v740
    %v742 = vpop.xlane.xlu0 %741
    %v743 = vrcp.pop %v742
    %v744 = vmul.f32 %v742, %v743
    %v745 = vsub.f32 1.0, %v744
    %v746 = vmul.f32 %v743, %v745
    %v747 = vadd.f32 %v743, %v746
    %vm748 = vweird.f32 %v742
    %vm749 = vweird.f32 %v743
    %vm750 = vmor %vm748, %vm749
    %v751 = vsel %vm750, %v743, %v747
    %v752 = vand.u32 2147483647, %v742
    %vm753 = vcmp.eq.f32.partialorder %v752, 8.507059e+37
    %v754 = vand.u32 %v742, 2147483648
    %v755 = vor.u32 1.1754944e-38, %v754
    %v756 = vsel %vm753, %v755, %v751
    %v757 = vmul.f32 %v739, %v756
    %758 = vst.msk [vmem:[%s9] sm:$0xff] %vm733, %v757
    %v759 = vsel %vm733, %v722, -inf
    %760 = vmax.xlane.f32.xlu0 %v759
    %v761 = vpop.xlane.xlu0 %760
    %v762 = vsub.f32 %v722, %v761
    %v763 = vmul.f32 %v762, 1.442695
    %v764 = vpow.pop %v763
    %v765 = vsel %vm733, %v764, 0.0
    %766 = vadd.xlane.f32.xlu0 %v765
    %v767 = vpop.xlane.xlu0 %766
    %v768 = vrcp.pop %v767
    %v769 = vmul.f32 %v767, %v768
    %v770 = vsub.f32 1.0, %v769
    %v771 = vmul.f32 %v768, %v770
    %v772 = vadd.f32 %v768, %v771
    %vm773 = vweird.f32 %v767
    %vm774 = vweird.f32 %v768
    %vm775 = vmor %vm773, %vm774
    %v776 = vsel %vm775, %v768, %v772
    %v777 = vand.u32 2147483647, %v767
    %vm778 = vcmp.eq.f32.partialorder %v777, 8.507059e+37
    %v779 = vand.u32 %v767, 2147483648
    %v780 = vor.u32 1.1754944e-38, %v779
    %v781 = vsel %vm778, %v780, %v776
    %v782 = vmul.f32 %v764, %v781
    %v783 = vadd.f32 %v782, 1e-16
    %v784 = vlog2.pop %v783
    %v785 = vmul.f32 %v784, 0.6931472
    %v786 = vmul.f32 %v782, %v785
    %v787 = vsel %vm733, %v786, 0.0
    %788 = vadd.xlane.f32.xlu0 %v787
    %v789 = vpop.xlane.xlu0 %788
    %v790 = vrot.slane %v789, 4
    %v791 = vadd.f32 %v789, %v790
    %v792 = vrot.slane %v791, 2
    %v793 = vadd.f32 %v791, %v792
    %v794 = vrot.slane %v793, 1
    %v795 = vadd.f32 %v793, %v794
    %s796 = vtos %v795
    %s797 = ssub.f32 0.0, %s796
    %s798 = smul.f32 %s797, 0.015625
    %v799 = vstv %s798
    %vm800 = vcmask 0
    %801 = vst.msk [vmem:[#allocation3] sm:$0x1] %vm800, %v799
    // Predicated region
    $region38: #{graph_learning_forward.1} parent=1 // pred_check
      _
    $region39: #{graph_learning_forward.1} parent=1 // pred_check_branch
      %803 = sbr.rel (0) target = $region41
    $region40: #{graph_learning_forward.1} parent=1 // pred_region
      _
    $region41: #{graph_learning_forward.1} parent=1 // pred_fallthru
      _
    // Predicated region
    $region42: #{graph_learning_forward.1} parent=1 // pred_check
      _
    $region43: #{graph_learning_forward.1} parent=1 // pred_check_branch
      %805 = sbr.rel (0) target = $region45
    $region44: #{graph_learning_forward.1} parent=1 // pred_region
      %807 = vsyncadd [#allocation4], 0
      %s809 = sshll.u32 [#allocation3], 4
      %s810 = int_to_ptr.vmem [resolvable:$true] %s809
      %s811 = sshll.u32 %s10, 4
      %s812 = int_to_ptr.hbm [resolvable:$true] %s811
      %814 = dma.vmem_to_hbm [thread:$0]  %s810, 16, %s812, [#allocation4]
    $region45: #{graph_learning_forward.1} parent=1 // pred_fallthru
      _
    // Predicated region
    $region46: #{graph_learning_forward.1} parent=1 // pred_check
      _
    $region47: #{graph_learning_forward.1} parent=1 // pred_check_branch
      %816 = sbr.rel (0) target = $region49
    $region48: #{graph_learning_forward.1} parent=1 // pred_region
      _
    $region49: #{graph_learning_forward.1} parent=1 // pred_fallthru
      _
    // Predicated region
    $region50: #{graph_learning_forward.1} parent=1 // pred_check
      _
    $region51: #{graph_learning_forward.1} parent=1 // pred_check_branch
      %818 = sbr.rel (0) target = $region53
    $region52: #{graph_learning_forward.1} parent=1 // pred_region
      %820 = dma.done [#allocation4], 16
    $region53: #{graph_learning_forward.1} parent=1 // pred_fallthru
      _
    %821 = vsyncpa [#allocation4], 1

</llo_original>
